<compile_context>
chip_gen: v7x
topology: tpu7x:2x2x1
jax: 0.10.0
libtpu: 0.0.40
codegen_flags: <defaults>
</compile_context>

<pallas_src>
import jax
import jax.numpy as jnp
from jax.experimental import pallas as pl
from jax.experimental.pallas import tpu as pltpu

_LANE = 128  # vreg lane width; batch tiles are multiples of this


def _round_up(x: int, m: int) -> int:
    return ((x + m - 1) // m) * m


def _fcn_kernel(x_ref, *refs):
    """refs = (w0, b0, w1, b1, ..., wL, bL, o_ref).

    Feature-major layout:
      x_ref : (F_in, TB)   batch tile, batch on the lane axis
      w_i   : (fan_out, fan_in)  whole array, VMEM resident
      b_i   : (fan_out, 1)
      o_ref : (F_out, TB)
    The whole network is evaluated for this batch tile with activations kept
    as in-kernel values (VMEM/vregs only): h <- tanh(W h + b) ... final layer
    without tanh.
    """
    o_ref = refs[-1]
    wb = refs[:-1]
    n = len(wb) // 2

    h = x_ref[...]                                    # (F_in, TB) f32
    for i in range(n):
        w = wb[2 * i][...]                            # (F_out_i, F_in_i)
        b = wb[2 * i + 1][...]                        # (F_out_i, 1)
        h = jnp.dot(w, h, preferred_element_type=jnp.float32) + b
        if i < n - 1:                                 # tanh on all but last layer
            h = jnp.tanh(h)
    o_ref[...] = h.astype(o_ref.dtype)


def fcn_forward(x, params, *, max_batch_tile: int = 2048):
    """Fused FCN forward.

    x      : (B, F_in) float32 (PyTorch convention; transposed internally).
    params : list of (w, b) with w: (fan_out, fan_in), b: (fan_out, 1).
    Returns (B, F_out) float32.
    """
    B, F_in = x.shape
    F_out = params[-1][0].shape[0]

    # --- batch tile selection (lane-major batch) ------------------------------
    Bp0 = _round_up(B, _LANE)
    if Bp0 >= 2 * _LANE:
        # Aim for >= 2 grid steps so v7x's two TensorCores both get work,
        # while keeping the tile large (cap) to amortize per-step overhead.
        TB = min(max_batch_tile, _round_up((Bp0 + 1) // 2, _LANE))
    else:
        TB = Bp0
    Bp = _round_up(B, TB)

    # Feature-major input, padded along the (lane) batch axis.
    xt = x.T                                          # (F_in, B)
    if Bp != B:
        xt = jnp.pad(xt, ((0, 0), (0, Bp - B)))

    flat_params = []
    for (w, b) in params:
        flat_params.append(w)
        flat_params.append(b)

    # x is batch-tiled along lanes; weights/biases are whole arrays re-used by
    # every grid step (constant index_map -> fetched once, VMEM resident).
    in_specs = [pl.BlockSpec((F_in, TB), lambda i: (0, i))]
    for (w, b) in params:
        in_specs.append(pl.BlockSpec(w.shape, lambda i: (0, 0)))
        in_specs.append(pl.BlockSpec(b.shape, lambda i: (0, 0)))
    out_specs = pl.BlockSpec((F_out, TB), lambda i: (0, i))

    # --- explicit scoped-VMEM budget (double-buffered tiles + weights + acts) --
    f32 = 4
    w_bytes = sum(w.size + b.size for (w, b) in params) * f32 * 2
    tile_io = 2 * (F_in * TB + F_out * TB) * f32      # double-buffered in/out tiles
    max_width = max([F_in] + [w.shape[0] for (w, _) in params])
    act_bytes = 4 * max_width * TB * f32              # activation slabs in flight
    vmem_limit = int(1.5 * (tile_io + w_bytes + act_bytes)) + (8 << 20)
    vmem_limit = min(vmem_limit, 64 << 20)            # never exceed v7x physical

    out_t = pl.pallas_call(
        _fcn_kernel,
        out_shape=jax.ShapeDtypeStruct((F_out, Bp), jnp.float32),
        grid=(Bp // TB,),
        in_specs=in_specs,
        out_specs=out_specs,
        compiler_params=pltpu.CompilerParams(
            dimension_semantics=("parallel",),        # shard batch tiles across TCs (v7x)
            vmem_limit_bytes=vmem_limit,
        ),
    )(xt, *flat_params)

    return out_t[:, :B].T                             # back to (B, F_out)


def init_fcn_params(key, n_input, n_output, n_hidden, n_layers):
    """Deterministic init mimicking PyTorch Linear default U(-1/sqrt(fan_in), +).

    Weights stored feature-major: w (fan_out, fan_in), b (fan_out, 1),
    matching the in-kernel h = W @ h + b layout.
    """
    params = []
    dims = [(n_input, n_hidden)] + [(n_hidden, n_hidden)] * (n_layers - 1) + [
        (n_hidden, n_output)
    ]
    for (fan_in, fan_out) in dims:
        key, kw, kb = jax.random.split(key, 3)
        bound = 1.0 / jnp.sqrt(fan_in)
        w = jax.random.uniform(kw, (fan_out, fan_in), jnp.float32, -bound, bound)
        b = jax.random.uniform(kb, (fan_out, 1), jnp.float32, -bound, bound)
        params.append((w, b))
    return params


def fcn_forward_ref(x, params):
    """Pure-JAX reference in standard batch-major math."""
    n = len(params)
    h = x
    for idx, (w, b) in enumerate(params):
        h = h @ w.T + b.T
        if idx < n - 1:
            h = jnp.tanh(h)
    return h


if __name__ == "__main__":
    N_INPUT, N_OUTPUT, N_HIDDEN, N_LAYERS = 4, 2, 32, 3
    BATCH = 8

    key = jax.random.PRNGKey(0)
    key, kx = jax.random.split(key)
    x = jax.random.normal(kx, (BATCH, N_INPUT), jnp.float32)

    params = init_fcn_params(key, N_INPUT, N_OUTPUT, N_HIDDEN, N_LAYERS)

    out = fcn_forward(x, params)
    out = jax.block_until_ready(out)

    ref = fcn_forward_ref(x, params)
    assert out.shape == (BATCH, N_OUTPUT), out.shape
    assert jnp.allclose(out, ref, atol=1e-5, rtol=1e-5), "mismatch vs reference"

    print("KERNEL_OK")
</pallas_src>

<mosaic_0001>
module attributes {stable_mosaic.version = 11 : i64} {
  func.func @_fcn_kernel(%arg0: i32, %arg1: memref<4x128xf32, #tpu.memory_space<vmem>>, %arg2: memref<32x4xf32, #tpu.memory_space<vmem>>, %arg3: memref<32x1xf32, #tpu.memory_space<vmem>>, %arg4: memref<32x32xf32, #tpu.memory_space<vmem>>, %arg5: memref<32x1xf32, #tpu.memory_space<vmem>>, %arg6: memref<32x32xf32, #tpu.memory_space<vmem>>, %arg7: memref<32x1xf32, #tpu.memory_space<vmem>>, %arg8: memref<2x32xf32, #tpu.memory_space<vmem>>, %arg9: memref<2x1xf32, #tpu.memory_space<vmem>>, %arg10: memref<2x128xf32, #tpu.memory_space<vmem>>) attributes {dimension_semantics = [#tpu.dimension_semantics<parallel>], iteration_bounds = array<i64: 1>, scalar_prefetch = 0 : i64, scratch_operands = 0 : i64, tpu.core_type = #tpu.core_type<tc>, window_params = [{transform_indices = @transform_0, window_bounds = array<i64: 4, 128>}, {pipeline_mode = #tpu.pipeline_mode<synchronous>, transform_indices = @transform_1, window_bounds = array<i64: 32, 4>}, {pipeline_mode = #tpu.pipeline_mode<synchronous>, transform_indices = @transform_2, window_bounds = array<i64: 32, 1>}, {pipeline_mode = #tpu.pipeline_mode<synchronous>, transform_indices = @transform_3, window_bounds = array<i64: 32, 32>}, {pipeline_mode = #tpu.pipeline_mode<synchronous>, transform_indices = @transform_4, window_bounds = array<i64: 32, 1>}, {pipeline_mode = #tpu.pipeline_mode<synchronous>, transform_indices = @transform_5, window_bounds = array<i64: 32, 32>}, {pipeline_mode = #tpu.pipeline_mode<synchronous>, transform_indices = @transform_6, window_bounds = array<i64: 32, 1>}, {pipeline_mode = #tpu.pipeline_mode<synchronous>, transform_indices = @transform_7, window_bounds = array<i64: 2, 32>}, {pipeline_mode = #tpu.pipeline_mode<synchronous>, transform_indices = @transform_8, window_bounds = array<i64: 2, 1>}, {transform_indices = @transform_9, window_bounds = array<i64: 2, 128>}]} {
    %c0 = arith.constant 0 : index
    %c0_0 = arith.constant 0 : index
    %0 = vector.load %arg1[%c0, %c0_0] : memref<4x128xf32, #tpu.memory_space<vmem>>, vector<4x128xf32>
    %c0_1 = arith.constant 0 : index
    %c0_2 = arith.constant 0 : index
    %1 = vector.load %arg2[%c0_1, %c0_2] : memref<32x4xf32, #tpu.memory_space<vmem>>, vector<32x4xf32>
    %c0_3 = arith.constant 0 : index
    %c0_4 = arith.constant 0 : index
    %2 = vector.load %arg3[%c0_3, %c0_4] : memref<32x1xf32, #tpu.memory_space<vmem>>, vector<32x1xf32>
    %cst = arith.constant dense<0.000000e+00> : vector<32x128xf32>
    %3 = tpu.matmul %1, %0, %cst {dimension_numbers = #tpu.dot_dimension_numbers<[1], [0], [0], [1], [0, 0, 1, 1], [], []>} : vector<32x4xf32>, vector<4x128xf32>, vector<32x128xf32> -> vector<32x128xf32>
    %4 = vector.broadcast %2 : vector<32x1xf32> to vector<32x128xf32>
    %5 = arith.addf %3, %4 : vector<32x128xf32>
    %6 = math.tanh %5 : vector<32x128xf32>
    %c0_5 = arith.constant 0 : index
    %c0_6 = arith.constant 0 : index
    %7 = vector.load %arg4[%c0_5, %c0_6] : memref<32x32xf32, #tpu.memory_space<vmem>>, vector<32x32xf32>
    %c0_7 = arith.constant 0 : index
    %c0_8 = arith.constant 0 : index
    %8 = vector.load %arg5[%c0_7, %c0_8] : memref<32x1xf32, #tpu.memory_space<vmem>>, vector<32x1xf32>
    %cst_9 = arith.constant dense<0.000000e+00> : vector<32x128xf32>
    %9 = tpu.matmul %7, %6, %cst_9 {dimension_numbers = #tpu.dot_dimension_numbers<[1], [0], [0], [1], [0, 0, 1, 1], [], []>} : vector<32x32xf32>, vector<32x128xf32>, vector<32x128xf32> -> vector<32x128xf32>
    %10 = vector.broadcast %8 : vector<32x1xf32> to vector<32x128xf32>
    %11 = arith.addf %9, %10 : vector<32x128xf32>
    %12 = math.tanh %11 : vector<32x128xf32>
    %c0_10 = arith.constant 0 : index
    %c0_11 = arith.constant 0 : index
    %13 = vector.load %arg6[%c0_10, %c0_11] : memref<32x32xf32, #tpu.memory_space<vmem>>, vector<32x32xf32>
    %c0_12 = arith.constant 0 : index
    %c0_13 = arith.constant 0 : index
    %14 = vector.load %arg7[%c0_12, %c0_13] : memref<32x1xf32, #tpu.memory_space<vmem>>, vector<32x1xf32>
    %cst_14 = arith.constant dense<0.000000e+00> : vector<32x128xf32>
    %15 = tpu.matmul %13, %12, %cst_14 {dimension_numbers = #tpu.dot_dimension_numbers<[1], [0], [0], [1], [0, 0, 1, 1], [], []>} : vector<32x32xf32>, vector<32x128xf32>, vector<32x128xf32> -> vector<32x128xf32>
    %16 = vector.broadcast %14 : vector<32x1xf32> to vector<32x128xf32>
    %17 = arith.addf %15, %16 : vector<32x128xf32>
    %18 = math.tanh %17 : vector<32x128xf32>
    %c0_15 = arith.constant 0 : index
    %c0_16 = arith.constant 0 : index
    %19 = vector.load %arg8[%c0_15, %c0_16] : memref<2x32xf32, #tpu.memory_space<vmem>>, vector<2x32xf32>
    %c0_17 = arith.constant 0 : index
    %c0_18 = arith.constant 0 : index
    %20 = vector.load %arg9[%c0_17, %c0_18] : memref<2x1xf32, #tpu.memory_space<vmem>>, vector<2x1xf32>
    %cst_19 = arith.constant dense<0.000000e+00> : vector<2x128xf32>
    %21 = tpu.matmul %19, %18, %cst_19 {dimension_numbers = #tpu.dot_dimension_numbers<[1], [0], [0], [1], [0, 0, 1, 1], [], []>} : vector<2x32xf32>, vector<32x128xf32>, vector<2x128xf32> -> vector<2x128xf32>
    %22 = vector.broadcast %20 : vector<2x1xf32> to vector<2x128xf32>
    %23 = arith.addf %21, %22 : vector<2x128xf32>
    %c0_20 = arith.constant 0 : index
    %c0_21 = arith.constant 0 : index
    %24 = vector.load %arg10[%c0_20, %c0_21] : memref<2x128xf32, #tpu.memory_space<vmem>>, vector<2x128xf32>
    tpu.vector_store %arg10[%c0_20, %c0_21], %23 {strides = array<i32>} : memref<2x128xf32, #tpu.memory_space<vmem>>, vector<2x128xf32>,
    return
  }
  func.func @transform_0(%arg0: i32) -> (i32, i32) {
    %c0_i32 = arith.constant 0 : i32
    %c0_i32_0 = arith.constant 0 : i32
    return %c0_i32, %arg0 : i32, i32
  }
  func.func @transform_1(%arg0: i32) -> (i32, i32) {
    %c0_i32 = arith.constant 0 : i32
    %c0_i32_0 = arith.constant 0 : i32
    %c0_i32_1 = arith.constant 0 : i32
    return %c0_i32, %c0_i32_0 : i32, i32
  }
  func.func @transform_2(%arg0: i32) -> (i32, i32) {
    %c0_i32 = arith.constant 0 : i32
    %c0_i32_0 = arith.constant 0 : i32
    %c0_i32_1 = arith.constant 0 : i32
    return %c0_i32, %c0_i32_0 : i32, i32
  }
  func.func @transform_3(%arg0: i32) -> (i32, i32) {
    %c0_i32 = arith.constant 0 : i32
    %c0_i32_0 = arith.constant 0 : i32
    %c0_i32_1 = arith.constant 0 : i32
    return %c0_i32, %c0_i32_0 : i32, i32
  }
  func.func @transform_4(%arg0: i32) -> (i32, i32) {
    %c0_i32 = arith.constant 0 : i32
    %c0_i32_0 = arith.constant 0 : i32
    %c0_i32_1 = arith.constant 0 : i32
    return %c0_i32, %c0_i32_0 : i32, i32
  }
  func.func @transform_5(%arg0: i32) -> (i32, i32) {
    %c0_i32 = arith.constant 0 : i32
    %c0_i32_0 = arith.constant 0 : i32
    %c0_i32_1 = arith.constant 0 : i32
    return %c0_i32, %c0_i32_0 : i32, i32
  }
  func.func @transform_6(%arg0: i32) -> (i32, i32) {
    %c0_i32 = arith.constant 0 : i32
    %c0_i32_0 = arith.constant 0 : i32
    %c0_i32_1 = arith.constant 0 : i32
    return %c0_i32, %c0_i32_0 : i32, i32
  }
  func.func @transform_7(%arg0: i32) -> (i32, i32) {
    %c0_i32 = arith.constant 0 : i32
    %c0_i32_0 = arith.constant 0 : i32
    %c0_i32_1 = arith.constant 0 : i32
    return %c0_i32, %c0_i32_0 : i32, i32
  }
  func.func @transform_8(%arg0: i32) -> (i32, i32) {
    %c0_i32 = arith.constant 0 : i32
    %c0_i32_0 = arith.constant 0 : i32
    %c0_i32_1 = arith.constant 0 : i32
    return %c0_i32, %c0_i32_0 : i32, i32
  }
  func.func @transform_9(%arg0: i32) -> (i32, i32) {
    %c0_i32 = arith.constant 0 : i32
    %c0_i32_0 = arith.constant 0 : i32
    return %c0_i32, %arg0 : i32, i32
  }
}

</mosaic_0001>

<llo_original>
// kernel: tpu_custom_call.1
$region0: #{tpu_custom_call.1}
  #allocation0 [shape = 'u32[]', space=smem, size = 0x4, offset = 0x4, fixed_abs, tag = 'smem constant byte address 0x4 - core index']
  #allocation1 [shape = 'u32[144,128]{1,0:T(1,128)}', space=vmem, size = 0x12000, scoped, tag = 'internal scratch']
  %s0 = inlined_call_operand.vmem [shape: f32[4,128], index: 0, kind: input, shape index: {}]
  %s1 = inlined_call_operand.vmem [shape: f32[32,4], index: 1, kind: input, shape index: {}]
  %s2 = inlined_call_operand.vmem [shape: f32[32,1], index: 2, kind: input, shape index: {}]
  %s3 = inlined_call_operand.vmem [shape: f32[32,32], index: 3, kind: input, shape index: {}]
  %s4 = inlined_call_operand.vmem [shape: f32[32,1], index: 4, kind: input, shape index: {}]
  %s5 = inlined_call_operand.vmem [shape: f32[32,32], index: 5, kind: input, shape index: {}]
  %s6 = inlined_call_operand.vmem [shape: f32[32,1], index: 6, kind: input, shape index: {}]
  %s7 = inlined_call_operand.vmem [shape: f32[2,32], index: 7, kind: input, shape index: {}]
  %s8 = inlined_call_operand.vmem [shape: f32[2,1], index: 8, kind: input, shape index: {}]
  %s9 = inlined_call_operand.hbm [shape: f32[2,128], index: 9, kind: output, shape index: {}]
  %s10 = sld [smem:[#allocation0]]
  $region46: #{tpu_custom_call.1} parent=0
    _
  %s12 = ssub.s32 1, %s10
  %s13 = scalar_select 0, %s12, %s10
  $region1: #{tpu_custom_call.1} parent=0
    #allocation2 [shape = 'u8[1024]{0}', space=vmem, size = 0x400, scoped, tag = 'output window, operand 0, single buffered']
    #allocation3 [shape = 's32[1]{0}', space=sflag, size = 0x4, scoped, tag = 'scoped memory for tpu_custom_call.1']
    %14 = vsyncpa [#allocation3], 0
    // Predicated region
    $region2: #{tpu_custom_call.1} parent=1 // pred_check
      _
    $region3: #{tpu_custom_call.1} parent=1 // pred_check_branch
      %16 = sbr.rel (0) target = $region5
    $region4: #{tpu_custom_call.1} parent=1 // pred_region
      _
    $region5: #{tpu_custom_call.1} parent=1 // pred_fallthru
      _
    // Predicated region
    $region6: #{tpu_custom_call.1} parent=1 // pred_check
      _
    $region7: #{tpu_custom_call.1} parent=1 // pred_check_branch
      %18 = sbr.rel (0) target = $region9
    $region8: #{tpu_custom_call.1} parent=1 // pred_region
      _
    $region9: #{tpu_custom_call.1} parent=1 // pred_fallthru
      _
    // Predicated region
    $region10: #{tpu_custom_call.1} parent=1 // pred_check
      _
    $region11: #{tpu_custom_call.1} parent=1 // pred_check_branch
      %20 = sbr.rel (0) target = $region13
    $region12: #{tpu_custom_call.1} parent=1 // pred_region
      _
    $region13: #{tpu_custom_call.1} parent=1 // pred_fallthru
      _
    // Predicated region
    $region14: #{tpu_custom_call.1} parent=1 // pred_check
      _
    $region15: #{tpu_custom_call.1} parent=1 // pred_check_branch
      %22 = sbr.rel (0) target = $region17
    $region16: #{tpu_custom_call.1} parent=1 // pred_region
      _
    $region17: #{tpu_custom_call.1} parent=1 // pred_fallthru
      _
    // Predicated region
    $region18: #{tpu_custom_call.1} parent=1 // pred_check
      _
    $region19: #{tpu_custom_call.1} parent=1 // pred_check_branch
      %24 = sbr.rel (0) target = $region21
    $region20: #{tpu_custom_call.1} parent=1 // pred_region
      _
    $region21: #{tpu_custom_call.1} parent=1 // pred_fallthru
      _
    // Predicated region
    $region22: #{tpu_custom_call.1} parent=1 // pred_check
      _
    $region23: #{tpu_custom_call.1} parent=1 // pred_check_branch
      %26 = sbr.rel (0) target = $region25
    $region24: #{tpu_custom_call.1} parent=1 // pred_region
      _
    $region25: #{tpu_custom_call.1} parent=1 // pred_fallthru
      _
    // Predicated region
    $region26: #{tpu_custom_call.1} parent=1 // pred_check
      _
    $region27: #{tpu_custom_call.1} parent=1 // pred_check_branch
      %28 = sbr.rel (0) target = $region29
    $region28: #{tpu_custom_call.1} parent=1 // pred_region
      _
    $region29: #{tpu_custom_call.1} parent=1 // pred_fallthru
      _
    // Predicated region
    $region30: #{tpu_custom_call.1} parent=1 // pred_check
      _
    $region31: #{tpu_custom_call.1} parent=1 // pred_check_branch
      %30 = sbr.rel (0) target = $region33
    $region32: #{tpu_custom_call.1} parent=1 // pred_region
      _
    $region33: #{tpu_custom_call.1} parent=1 // pred_fallthru
      _
    // Predicated region
    $region34: #{tpu_custom_call.1} parent=1 // pred_check
      _
    $region35: #{tpu_custom_call.1} parent=1 // pred_check_branch
      %32 = sbr.rel (0) target = $region37
    $region36: #{tpu_custom_call.1} parent=1 // pred_region
      _
    $region37: #{tpu_custom_call.1} parent=1 // pred_fallthru
      _
    %v33 = vld [vmem:[%s0] sm:$0xf]
    %v34 = vld [vmem:[%s1] sm:$0xff]
    %v35 = vld [vmem:[%s1 + $0x8] sm:$0xff]
    %v36 = vld [vmem:[%s1 + $0x10] sm:$0xff]
    %v37 = vld [vmem:[%s1 + $0x18] sm:$0xff]
    %v38 = vld [vmem:[%s2] sm:$0xff]
    %v39 = vld [vmem:[%s2 + $0x8] sm:$0xff]
    %v40 = vld [vmem:[%s2 + $0x10] sm:$0xff]
    %v41 = vld [vmem:[%s2 + $0x18] sm:$0xff]
    %43 = vset.pattern.permute.xlu0 0
    %44 = vperm.xlu0 %43, %v38
    %v45 = vpop.permute.xlu0 %44
    %48 = vset.pattern.permute.xlu0 0
    %49 = vperm.xlu0 %48, %v39
    %v50 = vpop.permute.xlu0 %49
    %53 = vset.pattern.permute.xlu0 0
    %54 = vperm.xlu0 %53, %v40
    %v55 = vpop.permute.xlu0 %54
    %58 = vset.pattern.permute.xlu0 0
    %59 = vperm.xlu0 %58, %v41
    %v60 = vpop.permute.xlu0 %59
    %vm62 = vcmask 31744
    %v64 = vsel %vm62, %v34, 0
    %v67 = vsel %vm62, %v35, 0
    %v70 = vsel %vm62, %v36, 0
    %v73 = vsel %vm62, %v37, 0
    %vm75 = vcmask 1043456
    %v77 = vsel %vm75, %v33, 0
    %79 = vmatprep.subr.mxu0 0.0
    %80 = vmatpush1.msra.mxu0 %v77
    %81 = vmatprep.subr.mxu0 0.0
    %82 = vmatpush1.msra.mxu0 0.0
    %83 = vmatprep.subr.mxu0 0.0
    %84 = vmatpush1.msra.mxu0 0.0
    %85 = vmatprep.subr.mxu0 0.0
    %86 = vmatpush1.msra.mxu0 0.0
    %87 = vmatprep.subr.mxu0 0.0
    %88 = vmatpush1.msra.mxu0 0.0
    %89 = vmatprep.subr.mxu0 0.0
    %90 = vmatpush1.msra.mxu0 0.0
    %91 = vmatprep.subr.mxu0 0.0
    %92 = vmatpush1.msra.mxu0 0.0
    %93 = vmatprep.subr.mxu0 0.0
    %94 = vmatpush1.msra.mxu0 0.0
    %95 = vmatprep.subr.mxu0 0.0
    %96 = vmatpush1.msra.mxu0 0.0
    %97 = vmatprep.subr.mxu0 0.0
    %98 = vmatpush1.msra.mxu0 0.0
    %99 = vmatprep.subr.mxu0 0.0
    %100 = vmatpush1.msra.mxu0 0.0
    %101 = vmatprep.subr.mxu0 0.0
    %102 = vmatpush1.msra.mxu0 0.0
    %103 = vmatprep.subr.mxu0 0.0
    %104 = vmatpush1.msra.mxu0 0.0
    %105 = vmatprep.subr.mxu0 0.0
    %106 = vmatpush1.msra.mxu0 0.0
    %107 = vmatprep.subr.mxu0 0.0
    %108 = vmatpush1.msra.mxu0 0.0
    %109 = vmatprep.subr.mxu0 0.0
    %110 = vmatpush1.msra.mxu0 0.0
    %111 = vmatprep.subr.mxu0 0.0
    %112 = vmatpush1.msra.mxu0 0.0
    %113 = vmatprep.subr.mxu0 0.0
    %114 = vmatpush1.msra.mxu0 0.0
    %115 = vmatprep.subr.mxu0 0.0
    %116 = vmatpush1.msra.mxu0 0.0
    %117 = vmatprep.subr.mxu0 0.0
    %118 = vmatpush1.msra.mxu0 0.0
    %119 = vmatprep.subr.mxu0 0.0
    %120 = vmatpush1.msra.mxu0 0.0
    %121 = vmatprep.subr.mxu0 0.0
    %122 = vmatpush1.msra.mxu0 0.0
    %123 = vmatprep.subr.mxu0 0.0
    %124 = vmatpush1.msra.mxu0 0.0
    %125 = vmatprep.subr.mxu0 0.0
    %126 = vmatpush1.msra.mxu0 0.0
    %127 = vmatprep.subr.mxu0 0.0
    %128 = vmatpush1.msra.mxu0 0.0
    %129 = vmatprep.subr.mxu0 0.0
    %130 = vmatpush1.msra.mxu0 0.0
    %131 = vmatprep.subr.mxu0 0.0
    %132 = vmatpush1.msra.mxu0 0.0
    %133 = vmatprep.subr.mxu0 0.0
    %134 = vmatpush1.msra.mxu0 0.0
    %135 = vmatprep.subr.mxu0 0.0
    %136 = vmatpush1.msra.mxu0 0.0
    %137 = vmatprep.subr.mxu0 0.0
    %138 = vmatpush1.msra.mxu0 0.0
    %139 = vmatprep.subr.mxu0 0.0
    %140 = vmatpush1.msra.mxu0 0.0
    %141 = vmatprep.subr.mxu0 0.0
    %142 = vmatpush1.msra.mxu0 0.0
    %143 = vmatprep.mubr.f32.mxu0 0.0
    %144 = vmatmul.mubr.f32.gmra.mrb[0].mxu0 %v64
    %v145 = vpop.f32.mrb[0].mxu0
    %v146 = vadd.f32 %v45, %v145
    %v147 = vpop.f32.mrb[0].mxu0
    %148 = vmatprep.mubr.f32.mxu0 0.0
    %149 = vmatmul.mubr.f32.gmra.mrb[0].mxu0 %v67
    %v150 = vpop.f32.mrb[0].mxu0
    %v151 = vadd.f32 %v50, %v150
    %v152 = vpop.f32.mrb[0].mxu0
    %153 = vmatprep.mubr.f32.mxu0 0.0
    %154 = vmatmul.mubr.f32.gmra.mrb[0].mxu0 %v70
    %v155 = vpop.f32.mrb[0].mxu0
    %v156 = vadd.f32 %v55, %v155
    %v157 = vpop.f32.mrb[0].mxu0
    %158 = vmatprep.mubr.f32.mxu0 0.0
    %159 = vmatmul.mubr.f32.gmra.mrb[0].mxu0 %v73
    %v160 = vpop.f32.mrb[0].mxu0
    %v161 = vadd.f32 %v60, %v160
    %v162 = vpop.f32.mrb[0].mxu0
    %163 = vdwg.mxu0
    %v164 = vtanh.pop %v146
    %v165 = vtanh.pop %v151
    %v166 = vtanh.pop %v156
    %v167 = vtanh.pop %v161
    %v168 = vld [vmem:[%s3] sm:$0xff]
    %v169 = vld [vmem:[%s3 + $0x8] sm:$0xff]
    %v170 = vld [vmem:[%s3 + $0x10] sm:$0xff]
    %v171 = vld [vmem:[%s3 + $0x18] sm:$0xff]
    %v172 = vld [vmem:[%s4] sm:$0xff]
    %v173 = vld [vmem:[%s4 + $0x8] sm:$0xff]
    %v174 = vld [vmem:[%s4 + $0x10] sm:$0xff]
    %v175 = vld [vmem:[%s4 + $0x18] sm:$0xff]
    %177 = vset.pattern.permute.xlu0 0
    %178 = vperm.xlu0 %177, %v172
    %v179 = vpop.permute.xlu0 %178
    %182 = vset.pattern.permute.xlu0 0
    %183 = vperm.xlu0 %182, %v173
    %v184 = vpop.permute.xlu0 %183
    %187 = vset.pattern.permute.xlu0 0
    %188 = vperm.xlu0 %187, %v174
    %v189 = vpop.permute.xlu0 %188
    %192 = vset.pattern.permute.xlu0 0
    %193 = vperm.xlu0 %192, %v175
    %v194 = vpop.permute.xlu0 %193
    %vm196 = vcmask 261120
    %v198 = vsel %vm196, %v168, 0
    %v201 = vsel %vm196, %v169, 0
    %v204 = vsel %vm196, %v170, 0
    %v207 = vsel %vm196, %v171, 0
    %209 = vmatprep.subr.mxu0 0.0
    %210 = vmatpush1.msra.mxu0 %v164
    %211 = vmatprep.subr.mxu0 0.0
    %212 = vmatpush1.msra.mxu0 %v165
    %213 = vmatprep.subr.mxu0 0.0
    %214 = vmatpush1.msra.mxu0 %v166
    %215 = vmatprep.subr.mxu0 0.0
    %216 = vmatpush1.msra.mxu0 %v167
    %217 = vmatprep.subr.mxu0 0.0
    %218 = vmatpush1.msra.mxu0 0.0
    %219 = vmatprep.subr.mxu0 0.0
    %220 = vmatpush1.msra.mxu0 0.0
    %221 = vmatprep.subr.mxu0 0.0
    %222 = vmatpush1.msra.mxu0 0.0
    %223 = vmatprep.subr.mxu0 0.0
    %224 = vmatpush1.msra.mxu0 0.0
    %225 = vmatprep.subr.mxu0 0.0
    %226 = vmatpush1.msra.mxu0 0.0
    %227 = vmatprep.subr.mxu0 0.0
    %228 = vmatpush1.msra.mxu0 0.0
    %229 = vmatprep.subr.mxu0 0.0
    %230 = vmatpush1.msra.mxu0 0.0
    %231 = vmatprep.subr.mxu0 0.0
    %232 = vmatpush1.msra.mxu0 0.0
    %233 = vmatprep.subr.mxu0 0.0
    %234 = vmatpush1.msra.mxu0 0.0
    %235 = vmatprep.subr.mxu0 0.0
    %236 = vmatpush1.msra.mxu0 0.0
    %237 = vmatprep.subr.mxu0 0.0
    %238 = vmatpush1.msra.mxu0 0.0
    %239 = vmatprep.subr.mxu0 0.0
    %240 = vmatpush1.msra.mxu0 0.0
    %241 = vmatprep.subr.mxu0 0.0
    %242 = vmatpush1.msra.mxu0 0.0
    %243 = vmatprep.subr.mxu0 0.0
    %244 = vmatpush1.msra.mxu0 0.0
    %245 = vmatprep.subr.mxu0 0.0
    %246 = vmatpush1.msra.mxu0 0.0
    %247 = vmatprep.subr.mxu0 0.0
    %248 = vmatpush1.msra.mxu0 0.0
    %249 = vmatprep.subr.mxu0 0.0
    %250 = vmatpush1.msra.mxu0 0.0
    %251 = vmatprep.subr.mxu0 0.0
    %252 = vmatpush1.msra.mxu0 0.0
    %253 = vmatprep.subr.mxu0 0.0
    %254 = vmatpush1.msra.mxu0 0.0
    %255 = vmatprep.subr.mxu0 0.0
    %256 = vmatpush1.msra.mxu0 0.0
    %257 = vmatprep.subr.mxu0 0.0
    %258 = vmatpush1.msra.mxu0 0.0
    %259 = vmatprep.subr.mxu0 0.0
    %260 = vmatpush1.msra.mxu0 0.0
    %261 = vmatprep.subr.mxu0 0.0
    %262 = vmatpush1.msra.mxu0 0.0
    %263 = vmatprep.subr.mxu0 0.0
    %264 = vmatpush1.msra.mxu0 0.0
    %265 = vmatprep.subr.mxu0 0.0
    %266 = vmatpush1.msra.mxu0 0.0
    %267 = vmatprep.subr.mxu0 0.0
    %268 = vmatpush1.msra.mxu0 0.0
    %269 = vmatprep.subr.mxu0 0.0
    %270 = vmatpush1.msra.mxu0 0.0
    %271 = vmatprep.subr.mxu0 0.0
    %272 = vmatpush1.msra.mxu0 0.0
    %273 = vmatprep.mubr.f32.mxu0 0.0
    %274 = vmatmul.mubr.f32.gmra.mrb[0].mxu0 %v198
    %v275 = vpop.f32.mrb[0].mxu0
    %v276 = vadd.f32 %v179, %v275
    %v277 = vpop.f32.mrb[0].mxu0
    %278 = vmatprep.mubr.f32.mxu0 0.0
    %279 = vmatmul.mubr.f32.gmra.mrb[0].mxu0 %v201
    %v280 = vpop.f32.mrb[0].mxu0
    %v281 = vadd.f32 %v184, %v280
    %v282 = vpop.f32.mrb[0].mxu0
    %283 = vmatprep.mubr.f32.mxu0 0.0
    %284 = vmatmul.mubr.f32.gmra.mrb[0].mxu0 %v204
    %v285 = vpop.f32.mrb[0].mxu0
    %v286 = vadd.f32 %v189, %v285
    %v287 = vpop.f32.mrb[0].mxu0
    %288 = vmatprep.mubr.f32.mxu0 0.0
    %289 = vmatmul.mubr.f32.gmra.mrb[0].mxu0 %v207
    %v290 = vpop.f32.mrb[0].mxu0
    %v291 = vadd.f32 %v194, %v290
    %v292 = vpop.f32.mrb[0].mxu0
    %293 = vdwg.mxu0
    %v294 = vtanh.pop %v276
    %v295 = vtanh.pop %v281
    %v296 = vtanh.pop %v286
    %v297 = vtanh.pop %v291
    %v298 = vld [vmem:[%s5] sm:$0xff]
    %v299 = vld [vmem:[%s5 + $0x8] sm:$0xff]
    %v300 = vld [vmem:[%s5 + $0x10] sm:$0xff]
    %v301 = vld [vmem:[%s5 + $0x18] sm:$0xff]
    %v302 = vld [vmem:[%s6] sm:$0xff]
    %v303 = vld [vmem:[%s6 + $0x8] sm:$0xff]
    %v304 = vld [vmem:[%s6 + $0x10] sm:$0xff]
    %v305 = vld [vmem:[%s6 + $0x18] sm:$0xff]
    %307 = vset.pattern.permute.xlu0 0
    %308 = vperm.xlu0 %307, %v302
    %v309 = vpop.permute.xlu0 %308
    %312 = vset.pattern.permute.xlu0 0
    %313 = vperm.xlu0 %312, %v303
    %v314 = vpop.permute.xlu0 %313
    %317 = vset.pattern.permute.xlu0 0
    %318 = vperm.xlu0 %317, %v304
    %v319 = vpop.permute.xlu0 %318
    %322 = vset.pattern.permute.xlu0 0
    %323 = vperm.xlu0 %322, %v305
    %v324 = vpop.permute.xlu0 %323
    %v327 = vsel %vm196, %v298, 0
    %v330 = vsel %vm196, %v299, 0
    %v333 = vsel %vm196, %v300, 0
    %v336 = vsel %vm196, %v301, 0
    %338 = vmatprep.subr.mxu0 0.0
    %339 = vmatpush1.msra.mxu0 %v294
    %340 = vmatprep.subr.mxu0 0.0
    %341 = vmatpush1.msra.mxu0 %v295
    %342 = vmatprep.subr.mxu0 0.0
    %343 = vmatpush1.msra.mxu0 %v296
    %344 = vmatprep.subr.mxu0 0.0
    %345 = vmatpush1.msra.mxu0 %v297
    %346 = vmatprep.subr.mxu0 0.0
    %347 = vmatpush1.msra.mxu0 0.0
    %348 = vmatprep.subr.mxu0 0.0
    %349 = vmatpush1.msra.mxu0 0.0
    %350 = vmatprep.subr.mxu0 0.0
    %351 = vmatpush1.msra.mxu0 0.0
    %352 = vmatprep.subr.mxu0 0.0
    %353 = vmatpush1.msra.mxu0 0.0
    %354 = vmatprep.subr.mxu0 0.0
    %355 = vmatpush1.msra.mxu0 0.0
    %356 = vmatprep.subr.mxu0 0.0
    %357 = vmatpush1.msra.mxu0 0.0
    %358 = vmatprep.subr.mxu0 0.0
    %359 = vmatpush1.msra.mxu0 0.0
    %360 = vmatprep.subr.mxu0 0.0
    %361 = vmatpush1.msra.mxu0 0.0
    %362 = vmatprep.subr.mxu0 0.0
    %363 = vmatpush1.msra.mxu0 0.0
    %364 = vmatprep.subr.mxu0 0.0
    %365 = vmatpush1.msra.mxu0 0.0
    %366 = vmatprep.subr.mxu0 0.0
    %367 = vmatpush1.msra.mxu0 0.0
    %368 = vmatprep.subr.mxu0 0.0
    %369 = vmatpush1.msra.mxu0 0.0
    %370 = vmatprep.subr.mxu0 0.0
    %371 = vmatpush1.msra.mxu0 0.0
    %372 = vmatprep.subr.mxu0 0.0
    %373 = vmatpush1.msra.mxu0 0.0
    %374 = vmatprep.subr.mxu0 0.0
    %375 = vmatpush1.msra.mxu0 0.0
    %376 = vmatprep.subr.mxu0 0.0
    %377 = vmatpush1.msra.mxu0 0.0
    %378 = vmatprep.subr.mxu0 0.0
    %379 = vmatpush1.msra.mxu0 0.0
    %380 = vmatprep.subr.mxu0 0.0
    %381 = vmatpush1.msra.mxu0 0.0
    %382 = vmatprep.subr.mxu0 0.0
    %383 = vmatpush1.msra.mxu0 0.0
    %384 = vmatprep.subr.mxu0 0.0
    %385 = vmatpush1.msra.mxu0 0.0
    %386 = vmatprep.subr.mxu0 0.0
    %387 = vmatpush1.msra.mxu0 0.0
    %388 = vmatprep.subr.mxu0 0.0
    %389 = vmatpush1.msra.mxu0 0.0
    %390 = vmatprep.subr.mxu0 0.0
    %391 = vmatpush1.msra.mxu0 0.0
    %392 = vmatprep.subr.mxu0 0.0
    %393 = vmatpush1.msra.mxu0 0.0
    %394 = vmatprep.subr.mxu0 0.0
    %395 = vmatpush1.msra.mxu0 0.0
    %396 = vmatprep.subr.mxu0 0.0
    %397 = vmatpush1.msra.mxu0 0.0
    %398 = vmatprep.subr.mxu0 0.0
    %399 = vmatpush1.msra.mxu0 0.0
    %400 = vmatprep.subr.mxu0 0.0
    %401 = vmatpush1.msra.mxu0 0.0
    %402 = vmatprep.mubr.f32.mxu0 0.0
    %403 = vmatmul.mubr.f32.gmra.mrb[0].mxu0 %v327
    %v404 = vpop.f32.mrb[0].mxu0
    %v405 = vadd.f32 %v309, %v404
    %v406 = vpop.f32.mrb[0].mxu0
    %407 = vmatprep.mubr.f32.mxu0 0.0
    %408 = vmatmul.mubr.f32.gmra.mrb[0].mxu0 %v330
    %v409 = vpop.f32.mrb[0].mxu0
    %v410 = vadd.f32 %v314, %v409
    %v411 = vpop.f32.mrb[0].mxu0
    %412 = vmatprep.mubr.f32.mxu0 0.0
    %413 = vmatmul.mubr.f32.gmra.mrb[0].mxu0 %v333
    %v414 = vpop.f32.mrb[0].mxu0
    %v415 = vadd.f32 %v319, %v414
    %v416 = vpop.f32.mrb[0].mxu0
    %417 = vmatprep.mubr.f32.mxu0 0.0
    %418 = vmatmul.mubr.f32.gmra.mrb[0].mxu0 %v336
    %v419 = vpop.f32.mrb[0].mxu0
    %v420 = vadd.f32 %v324, %v419
    %v421 = vpop.f32.mrb[0].mxu0
    %422 = vdwg.mxu0
    %v423 = vtanh.pop %v405
    %v424 = vtanh.pop %v410
    %v425 = vtanh.pop %v415
    %v426 = vtanh.pop %v420
    %v427 = vld [vmem:[%s7] sm:$0x3]
    %v428 = vld [vmem:[%s8] sm:$0x3]
    %430 = vset.pattern.permute.xlu0 0
    %431 = vperm.xlu0 %430, %v428
    %v432 = vpop.permute.xlu0 %431
    %v435 = vsel %vm196, %v427, 0
    %437 = vmatprep.subr.mxu0 0.0
    %438 = vmatpush1.msra.mxu0 %v423
    %439 = vmatprep.subr.mxu0 0.0
    %440 = vmatpush1.msra.mxu0 %v424
    %441 = vmatprep.subr.mxu0 0.0
    %442 = vmatpush1.msra.mxu0 %v425
    %443 = vmatprep.subr.mxu0 0.0
    %444 = vmatpush1.msra.mxu0 %v426
    %445 = vmatprep.subr.mxu0 0.0
    %446 = vmatpush1.msra.mxu0 0.0
    %447 = vmatprep.subr.mxu0 0.0
    %448 = vmatpush1.msra.mxu0 0.0
    %449 = vmatprep.subr.mxu0 0.0
    %450 = vmatpush1.msra.mxu0 0.0
    %451 = vmatprep.subr.mxu0 0.0
    %452 = vmatpush1.msra.mxu0 0.0
    %453 = vmatprep.subr.mxu0 0.0
    %454 = vmatpush1.msra.mxu0 0.0
    %455 = vmatprep.subr.mxu0 0.0
    %456 = vmatpush1.msra.mxu0 0.0
    %457 = vmatprep.subr.mxu0 0.0
    %458 = vmatpush1.msra.mxu0 0.0
    %459 = vmatprep.subr.mxu0 0.0
    %460 = vmatpush1.msra.mxu0 0.0
    %461 = vmatprep.subr.mxu0 0.0
    %462 = vmatpush1.msra.mxu0 0.0
    %463 = vmatprep.subr.mxu0 0.0
    %464 = vmatpush1.msra.mxu0 0.0
    %465 = vmatprep.subr.mxu0 0.0
    %466 = vmatpush1.msra.mxu0 0.0
    %467 = vmatprep.subr.mxu0 0.0
    %468 = vmatpush1.msra.mxu0 0.0
    %469 = vmatprep.subr.mxu0 0.0
    %470 = vmatpush1.msra.mxu0 0.0
    %471 = vmatprep.subr.mxu0 0.0
    %472 = vmatpush1.msra.mxu0 0.0
    %473 = vmatprep.subr.mxu0 0.0
    %474 = vmatpush1.msra.mxu0 0.0
    %475 = vmatprep.subr.mxu0 0.0
    %476 = vmatpush1.msra.mxu0 0.0
    %477 = vmatprep.subr.mxu0 0.0
    %478 = vmatpush1.msra.mxu0 0.0
    %479 = vmatprep.subr.mxu0 0.0
    %480 = vmatpush1.msra.mxu0 0.0
    %481 = vmatprep.subr.mxu0 0.0
    %482 = vmatpush1.msra.mxu0 0.0
    %483 = vmatprep.subr.mxu0 0.0
    %484 = vmatpush1.msra.mxu0 0.0
    %485 = vmatprep.subr.mxu0 0.0
    %486 = vmatpush1.msra.mxu0 0.0
    %487 = vmatprep.subr.mxu0 0.0
    %488 = vmatpush1.msra.mxu0 0.0
    %489 = vmatprep.subr.mxu0 0.0
    %490 = vmatpush1.msra.mxu0 0.0
    %491 = vmatprep.subr.mxu0 0.0
    %492 = vmatpush1.msra.mxu0 0.0
    %493 = vmatprep.subr.mxu0 0.0
    %494 = vmatpush1.msra.mxu0 0.0
    %495 = vmatprep.subr.mxu0 0.0
    %496 = vmatpush1.msra.mxu0 0.0
    %497 = vmatprep.subr.mxu0 0.0
    %498 = vmatpush1.msra.mxu0 0.0
    %499 = vmatprep.subr.mxu0 0.0
    %500 = vmatpush1.msra.mxu0 0.0
    %501 = vmatprep.mubr.f32.mxu0 0.0
    %502 = vmatmul.mubr.f32.gmra.mrb[0].mxu0 %v435
    %v503 = vpop.f32.mrb[0].mxu0
    %v504 = vadd.f32 %v432, %v503
    %v505 = vpop.f32.mrb[0].mxu0
    %506 = vdwg.mxu0
    %507 = vst [vmem:[#allocation2] sm:$0x3] %v504
    // Predicated region
    $region38: #{tpu_custom_call.1} parent=1 // pred_check
      _
    $region39: #{tpu_custom_call.1} parent=1 // pred_check_branch
      %509 = sbr.rel (0) target = $region41
    $region40: #{tpu_custom_call.1} parent=1 // pred_region
      %s511 = ssub.s32 32, 32
      %512 = vsyncadd [#allocation3], %s511
      %s514 = sshll.u32 [#allocation2], 4
      %s515 = int_to_ptr.vmem [resolvable:$true] %s514
      %517 = dma.vmem_to_hbm [thread:$0]  %s515, 32, %s9, [#allocation3]
    $region41: #{tpu_custom_call.1} parent=1 // pred_fallthru
      _
    // Predicated region
    $region42: #{tpu_custom_call.1} parent=1 // pred_check
      _
    $region43: #{tpu_custom_call.1} parent=1 // pred_check_branch
      %519 = sbr.rel (0) target = $region45
    $region44: #{tpu_custom_call.1} parent=1 // pred_region
      %520 = dma.done [#allocation3], 32
    $region45: #{tpu_custom_call.1} parent=1 // pred_fallthru
      _
    %521 = vsyncpa [#allocation3], 1

</llo_original>
